<compile_context>
chip_gen: v6e
topology: v6e:2x2x1
jax: 0.10.0
libtpu: 0.0.40
codegen_flags: <defaults>
</compile_context>

<pallas_src>
import functools

import jax
import jax.numpy as jnp
from jax import lax
from jax.experimental import pallas as pl
from jax.experimental.pallas import tpu as pltpu

LANE = 128
SUBLANE = 8
MXU_TILE = 256  # v6e / v7x MXU pass is 256x256 (v5e is 4x128^2, 256 still fine)


def _round_up(n, m):
    return ((n + m - 1) // m) * m


# ----------------------------------------------------------------------------
# Kernel
# ----------------------------------------------------------------------------
def classifier_kernel(x_ref, w_ref, b_ref, out_ref, *, out_dim, bf16_epilogue=False):
    """x_ref: (bt, P) bf16; w_ref: (4, P, P) bf16; b_ref: (4, P) f32;
    out_ref: (bt, P) f32.  P is the common lane-padded feature width."""
    h = x_ref[...]                       # (bt, P) matmul dtype
    biases = b_ref[...]                  # (4, P)  f32 — one tiny load, sliced in-register
    mm_dtype = w_ref.dtype

    # fc1/fc2/fc3 -> ReLU   (nn.Dropout(0.3): identity in eval/inference mode)
    # TODO(synk): training-mode dropout would need pltpu.prng_seed /
    #             pltpu.prng_random_bits and a per-layer mask; eval semantics used.
    for layer in range(3):
        h = jnp.dot(h, w_ref[layer], preferred_element_type=jnp.float32)
        if bf16_epilogue:
            # v6e/v7x: VPU has a bf16 path — keep the epilogue narrow.
            h = jnp.maximum(h.astype(mm_dtype)
                            + biases[layer:layer + 1, :].astype(mm_dtype), 0)
        else:
            # Safe on all generations (v5e VPU has no bf16 path).
            h = jnp.maximum(h + biases[layer:layer + 1, :], 0.0).astype(mm_dtype)

    # fc4 -> log_softmax over features (padded lanes masked out of the reduction)
    logits = jnp.dot(h, w_ref[3], preferred_element_type=jnp.float32)
    logits = logits + biases[3:4, :]
    col = lax.broadcasted_iota(jnp.int32, logits.shape, 1)
    logits = jnp.where(col < out_dim, logits, -1e30)
    m = jnp.max(logits, axis=1, keepdims=True)
    shifted = logits - m
    lse = jnp.log(jnp.sum(jnp.exp(shifted), axis=1, keepdims=True))
    out_ref[...] = (shifted - lse).astype(out_ref.dtype)


# ----------------------------------------------------------------------------
# One-time parameter preparation (hoisted out of the per-call path)
# ----------------------------------------------------------------------------
def prepare_params(params, *, matmul_dtype=jnp.bfloat16):
    """Pad, stack and cast the four Linear layers ONCE; reuse across calls.

    Zero-padding is semantics-preserving: padded input/hidden columns stay 0
    through ReLU, padded weight rows/cols are 0, and padded logits are masked
    inside the kernel before the log_softmax reduction.
    """
    names = ("fc1", "fc2", "fc3", "fc4")
    dims_in = [params[n][0].shape[0] for n in names]
    dims_out = [params[n][0].shape[1] for n in names]
    # Common lane-dense padded width so all four weights stack into ONE operand
    # (2 DMA streams instead of 8).
    # TODO(synk): per-layer K (unstacked weights) would cut padded-K MXU cycles
    #             if hidden dims grow asymmetrically; irrelevant at these sizes.
    P = max(_round_up(d, LANE) for d in dims_in + dims_out)

    w_stack = jnp.zeros((4, P, P), matmul_dtype)
    b_stack = jnp.zeros((4, P), jnp.float32)
    for i, n in enumerate(names):
        w, b = params[n]
        w_stack = w_stack.at[i, : w.shape[0], : w.shape[1]].set(w.astype(matmul_dtype))
        b_stack = b_stack.at[i, : b.shape[1]].set(b.reshape(-1))

    return {
        "w_stack": w_stack,
        "b_stack": b_stack,
        "in_dim": dims_in[0],
        "out_dim": dims_out[-1],
        "padded_dim": P,
        "matmul_dtype": matmul_dtype,
    }


# ----------------------------------------------------------------------------
# Batch tiling / VMEM policy
# ----------------------------------------------------------------------------
def _choose_batch_tile(B):
    """Returns (batch_tile, padded_batch).

    * Small batches: a single VMEM-resident grid step (no pipeline overhead).
    * Large batches: tiles that are a multiple of 256 rows (full MXU M-pass on
      v6e/v7x), capped at 2048 rows, and giving >= 2 grid steps so the
      "parallel" batch axis can be megacore-sharded across v7x's 2 TensorCores
      while keeping the resident set far below v7x's 64 MiB VMEM.
    """
    Bp = _round_up(B, SUBLANE)
    if Bp <= 2048:
        return Bp, Bp
    tile = min(2048, _round_up(-(-Bp // 2), MXU_TILE))
    Bp = _round_up(B, tile)
    return tile, Bp


# ----------------------------------------------------------------------------
# Forward wrapper
# ----------------------------------------------------------------------------
def classifier_forward(x, prepared, *, batch_tile=None, bf16_epilogue=False):
    """x: [B, input_size] float32; prepared: output of prepare_params()."""
    B, in_dim = x.shape
    assert in_dim == prepared["in_dim"], "input feature size mismatch"
    P = prepared["padded_dim"]
    out_dim = prepared["out_dim"]
    mm_dtype = prepared["matmul_dtype"]
    w_stack = prepared["w_stack"]
    b_stack = prepared["b_stack"]

    if batch_tile is None:
        batch_tile, Bp = _choose_batch_tile(B)
    else:
        assert batch_tile % SUBLANE == 0, "batch_tile must be a multiple of 8"
        Bp = _round_up(B, batch_tile)
    num_steps = Bp // batch_tile

    # Cheap input pad: cast to the matmul dtype first, then zero-pad.
    xp = jnp.pad(x.astype(mm_dtype), ((0, Bp - B), (0, P - in_dim)))

    itemsize = jnp.dtype(mm_dtype).itemsize
    cost = pl.CostEstimate(
        flops=2 * Bp * P * P * 4,
        transcendentals=Bp * P,                       # exp in log_softmax
        bytes_accessed=(Bp * P * itemsize             # x
                        + 4 * P * P * itemsize        # weights
                        + 4 * P * 4                   # biases
                        + Bp * P * 4),                # output
    )

    # Scoped-VMEM budget: double-buffered activation/output tiles + (possibly
    # double-buffered) constants, with headroom — keeps large tiles from
    # tripping the 32 MiB scoped default on v6e/v7x.
    per_step = batch_tile * P * (itemsize + 4)
    const_bytes = 4 * P * P * itemsize + 4 * P * 4
    vmem_limit = int(2 * per_step * 1.25 + 2 * const_bytes) + (2 << 20)
    vmem_limit = max(16 << 20, min(vmem_limit, 64 << 20))

    def _build(single_buffer_consts):
        # Constant-index weight/bias blocks: single-buffer them on multi-step
        # grids (double-buffering a never-changing block only wastes VMEM).
        const_kw = (dict(pipeline_mode=pl.Buffered(1))
                    if single_buffer_consts else {})
        return pl.pallas_call(
            functools.partial(classifier_kernel, out_dim=out_dim,
                              bf16_epilogue=bf16_epilogue),
            out_shape=jax.ShapeDtypeStruct((Bp, P), jnp.float32),
            grid_spec=pltpu.PrefetchScalarGridSpec(
                num_scalar_prefetch=0,
                grid=(num_steps,),
                in_specs=[
                    pl.BlockSpec((batch_tile, P), lambda i: (i, 0)),       # activations
                    pl.BlockSpec((4, P, P), lambda i: (0, 0, 0), **const_kw),  # weights
                    pl.BlockSpec((4, P), lambda i: (0, 0), **const_kw),        # biases
                ],
                out_specs=pl.BlockSpec((batch_tile, P), lambda i: (i, 0)),
            ),
            compiler_params=pltpu.CompilerParams(
                dimension_semantics=("parallel",),
                vmem_limit_bytes=vmem_limit),
            cost_estimate=cost,
        )

    if num_steps > 1:
        try:
            out_padded = _build(True)(xp, w_stack, b_stack)
        except Exception:
            # pipeline_mode=pl.Buffered not available in this jax version:
            # fall back to default (double-buffered) constant blocks.
            out_padded = _build(False)(xp, w_stack, b_stack)
    else:
        out_padded = _build(False)(xp, w_stack, b_stack)

    # Padded batch rows / feature lanes are sliced off here; never consume
    # out_padded directly.
    return out_padded[:B, :out_dim]


# ----------------------------------------------------------------------------
# Init + pure-JAX reference
# ----------------------------------------------------------------------------
def init_params(key, input_size, hid1, hid2, hid3, output_size):
    """Deterministic synthetic init (uniform ~ PyTorch default fan-in bound)."""
    sizes = [(input_size, hid1), (hid1, hid2), (hid2, hid3), (hid3, output_size)]
    names = ["fc1", "fc2", "fc3", "fc4"]
    params = {}
    for name, (fan_in, fan_out) in zip(names, sizes):
        key, kw, kb = jax.random.split(key, 3)
        bound = 1.0 / jnp.sqrt(fan_in)
        w = jax.random.uniform(kw, (fan_in, fan_out), jnp.float32, -bound, bound)
        b = jax.random.uniform(kb, (1, fan_out), jnp.float32, -bound, bound)
        params[name] = (w, b)
    return params


def reference_forward(x, params, *, matmul_dtype=jnp.float32):
    """Plain-JAX reference (eval-mode dropout == identity)."""
    h = x.astype(matmul_dtype)
    for name in ["fc1", "fc2", "fc3"]:
        w, b = params[name]
        h = jnp.dot(h, w.astype(matmul_dtype),
                    preferred_element_type=jnp.float32) + b
        h = jnp.maximum(h, 0.0).astype(matmul_dtype)
    w, b = params["fc4"]
    logits = jnp.dot(h, w.astype(matmul_dtype),
                     preferred_element_type=jnp.float32) + b
    return jax.nn.log_softmax(logits, axis=1)


if __name__ == "__main__":
    # Small shapes consistent with the module's MLP-on-flattened-input usage.
    B, input_size = 16, 32
    hid1, hid2, hid3, output_size = 64, 64, 32, 16

    key = jax.random.PRNGKey(0)
    key, kx = jax.random.split(key)
    x = jax.random.normal(kx, (B, input_size), jnp.float32)
    params = init_params(key, input_size, hid1, hid2, hid3, output_size)

    # One-time padded/stacked/bf16 params — reused across every forward call.
    prepared = prepare_params(params)
    jax.block_until_ready((prepared["w_stack"], prepared["b_stack"]))

    # Small batch: single VMEM-resident grid step.
    out = jax.block_until_ready(classifier_forward(x, prepared))
    ref_bf16 = reference_forward(x, params, matmul_dtype=jnp.bfloat16)
    ref_f32 = reference_forward(x, params, matmul_dtype=jnp.float32)
    assert out.shape == (B, output_size)
    assert jnp.allclose(out, ref_bf16, atol=1e-4, rtol=1e-4), \
        "mismatch vs bf16-consistent reference"
    assert jnp.allclose(out, ref_f32, atol=5e-2, rtol=5e-2), \
        "mismatch vs f32 reference"

    # Larger batch with an explicit 256-row tile: exercises the multi-step
    # "parallel" batch grid (megacore-shardable on v7x) and single-buffered
    # constant weight/bias blocks.
    B2 = 500
    key, kx2 = jax.random.split(key)
    x2 = jax.random.normal(kx2, (B2, input_size), jnp.float32)
    out2 = jax.block_until_ready(classifier_forward(x2, prepared, batch_tile=256))
    ref2 = reference_forward(x2, params, matmul_dtype=jnp.bfloat16)
    assert out2.shape == (B2, output_size)
    assert jnp.allclose(out2, ref2, atol=1e-4, rtol=1e-4), \
        "tiled-path mismatch vs bf16-consistent reference"

    print("KERNEL_OK")
</pallas_src>

<mosaic_0001>
module attributes {stable_mosaic.version = 11 : i64} {
  func.func @classifier_kernel(%arg0: i32, %arg1: memref<16x128xbf16, #tpu.memory_space<vmem>>, %arg2: memref<4x128x128xbf16, #tpu.memory_space<vmem>>, %arg3: memref<4x128xf32, #tpu.memory_space<vmem>>, %arg4: memref<16x128xf32, #tpu.memory_space<vmem>>) attributes {dimension_semantics = [#tpu.dimension_semantics<parallel>], iteration_bounds = array<i64: 1>, scalar_prefetch = 0 : i64, scratch_operands = 0 : i64, tpu.core_type = #tpu.core_type<tc>, window_params = [{transform_indices = @transform_0, window_bounds = array<i64: 16, 128>}, {pipeline_mode = #tpu.pipeline_mode<synchronous>, transform_indices = @transform_1, window_bounds = array<i64: 4, 128, 128>}, {pipeline_mode = #tpu.pipeline_mode<synchronous>, transform_indices = @transform_2, window_bounds = array<i64: 4, 128>}, {transform_indices = @transform_3, window_bounds = array<i64: 16, 128>}]} {
    %c0 = arith.constant 0 : index
    %c0_0 = arith.constant 0 : index
    %0 = vector.load %arg1[%c0, %c0_0] : memref<16x128xbf16, #tpu.memory_space<vmem>>, vector<16x128xbf16>
    %c0_1 = arith.constant 0 : index
    %c0_2 = arith.constant 0 : index
    %1 = vector.load %arg3[%c0_1, %c0_2] : memref<4x128xf32, #tpu.memory_space<vmem>>, vector<4x128xf32>
    %c0_3 = arith.constant 0 : index
    %c0_4 = arith.constant 0 : index
    %c0_5 = arith.constant 0 : index
    %2 = vector.load %arg2[%c0_3, %c0_4, %c0_5] : memref<4x128x128xbf16, #tpu.memory_space<vmem>>, vector<1x128x128xbf16>
    %3 = vector.shape_cast %2 : vector<1x128x128xbf16> to vector<128x128xbf16>
    %cst = arith.constant dense<0.000000e+00> : vector<16x128xf32>
    %4 = tpu.matmul %0, %3, %cst {dimension_numbers = #tpu.dot_dimension_numbers<[1], [0], [0], [1], [0, 0, 1, 1], [], []>} : vector<16x128xbf16>, vector<128x128xbf16>, vector<16x128xf32> -> vector<16x128xf32>
    %5 = vector.extract_strided_slice %1 {offsets = [0, 0], sizes = [1, 128], strides = [1, 1]} : vector<4x128xf32> to vector<1x128xf32>
    %6 = vector.broadcast %5 : vector<1x128xf32> to vector<16x128xf32>
    %7 = arith.addf %4, %6 : vector<16x128xf32>
    %cst_6 = arith.constant 0.000000e+00 : f32
    %8 = vector.broadcast %cst_6 : f32 to vector<16x128xf32>
    %9 = arith.maximumf %7, %8 : vector<16x128xf32>
    %10 = arith.truncf %9 : vector<16x128xf32> to vector<16x128xbf16>
    %c1 = arith.constant 1 : index
    %c0_7 = arith.constant 0 : index
    %c0_8 = arith.constant 0 : index
    %11 = vector.load %arg2[%c1, %c0_7, %c0_8] : memref<4x128x128xbf16, #tpu.memory_space<vmem>>, vector<1x128x128xbf16>
    %12 = vector.shape_cast %11 : vector<1x128x128xbf16> to vector<128x128xbf16>
    %cst_9 = arith.constant dense<0.000000e+00> : vector<16x128xf32>
    %13 = tpu.matmul %10, %12, %cst_9 {dimension_numbers = #tpu.dot_dimension_numbers<[1], [0], [0], [1], [0, 0, 1, 1], [], []>} : vector<16x128xbf16>, vector<128x128xbf16>, vector<16x128xf32> -> vector<16x128xf32>
    %14 = vector.extract_strided_slice %1 {offsets = [1, 0], sizes = [1, 128], strides = [1, 1]} : vector<4x128xf32> to vector<1x128xf32>
    %15 = vector.broadcast %14 : vector<1x128xf32> to vector<16x128xf32>
    %16 = arith.addf %13, %15 : vector<16x128xf32>
    %cst_10 = arith.constant 0.000000e+00 : f32
    %17 = vector.broadcast %cst_10 : f32 to vector<16x128xf32>
    %18 = arith.maximumf %16, %17 : vector<16x128xf32>
    %19 = arith.truncf %18 : vector<16x128xf32> to vector<16x128xbf16>
    %c2 = arith.constant 2 : index
    %c0_11 = arith.constant 0 : index
    %c0_12 = arith.constant 0 : index
    %20 = vector.load %arg2[%c2, %c0_11, %c0_12] : memref<4x128x128xbf16, #tpu.memory_space<vmem>>, vector<1x128x128xbf16>
    %21 = vector.shape_cast %20 : vector<1x128x128xbf16> to vector<128x128xbf16>
    %cst_13 = arith.constant dense<0.000000e+00> : vector<16x128xf32>
    %22 = tpu.matmul %19, %21, %cst_13 {dimension_numbers = #tpu.dot_dimension_numbers<[1], [0], [0], [1], [0, 0, 1, 1], [], []>} : vector<16x128xbf16>, vector<128x128xbf16>, vector<16x128xf32> -> vector<16x128xf32>
    %23 = vector.extract_strided_slice %1 {offsets = [2, 0], sizes = [1, 128], strides = [1, 1]} : vector<4x128xf32> to vector<1x128xf32>
    %24 = vector.broadcast %23 : vector<1x128xf32> to vector<16x128xf32>
    %25 = arith.addf %22, %24 : vector<16x128xf32>
    %cst_14 = arith.constant 0.000000e+00 : f32
    %26 = vector.broadcast %cst_14 : f32 to vector<16x128xf32>
    %27 = arith.maximumf %25, %26 : vector<16x128xf32>
    %28 = arith.truncf %27 : vector<16x128xf32> to vector<16x128xbf16>
    %c3 = arith.constant 3 : index
    %c0_15 = arith.constant 0 : index
    %c0_16 = arith.constant 0 : index
    %29 = vector.load %arg2[%c3, %c0_15, %c0_16] : memref<4x128x128xbf16, #tpu.memory_space<vmem>>, vector<1x128x128xbf16>
    %30 = vector.shape_cast %29 : vector<1x128x128xbf16> to vector<128x128xbf16>
    %cst_17 = arith.constant dense<0.000000e+00> : vector<16x128xf32>
    %31 = tpu.matmul %28, %30, %cst_17 {dimension_numbers = #tpu.dot_dimension_numbers<[1], [0], [0], [1], [0, 0, 1, 1], [], []>} : vector<16x128xbf16>, vector<128x128xbf16>, vector<16x128xf32> -> vector<16x128xf32>
    %32 = vector.extract_strided_slice %1 {offsets = [3, 0], sizes = [1, 128], strides = [1, 1]} : vector<4x128xf32> to vector<1x128xf32>
    %33 = vector.broadcast %32 : vector<1x128xf32> to vector<16x128xf32>
    %34 = arith.addf %31, %33 : vector<16x128xf32>
    %35 = tpu.iota {dimensions = array<i32: 1>} : vector<16x128xi32>
    %c16_i32 = arith.constant 16 : i32
    %36 = vector.broadcast %c16_i32 : i32 to vector<16x128xi32>
    %37 = arith.cmpi slt, %35, %36 : vector<16x128xi32>
    %cst_18 = arith.constant -1.000000e+30 : f32
    %38 = vector.broadcast %cst_18 : f32 to vector<16x128xf32>
    %39 = arith.select %37, %34, %38 : vector<16x128xi1>, vector<16x128xf32>
    %cst_19 = arith.constant dense<0xFF800000> : vector<16xf32>
    %40 = vector.multi_reduction <maximumf>, %39, %cst_19 [1] : vector<16x128xf32> to vector<16xf32>
    %41 = vector.shape_cast %40 : vector<16xf32> to vector<16x1xf32>
    %42 = vector.broadcast %41 : vector<16x1xf32> to vector<16x128xf32>
    %43 = arith.subf %39, %42 : vector<16x128xf32>
    %44 = math.exp %43 : vector<16x128xf32>
    %cst_20 = arith.constant dense<0.000000e+00> : vector<16xf32>
    %45 = vector.multi_reduction <add>, %44, %cst_20 [1] : vector<16x128xf32> to vector<16xf32>
    %46 = vector.shape_cast %45 : vector<16xf32> to vector<16x1xf32>
    %47 = math.log %46 : vector<16x1xf32>
    %48 = vector.broadcast %47 : vector<16x1xf32> to vector<16x128xf32>
    %49 = arith.subf %43, %48 : vector<16x128xf32>
    %c0_21 = arith.constant 0 : index
    %c0_22 = arith.constant 0 : index
    %50 = vector.load %arg4[%c0_21, %c0_22] : memref<16x128xf32, #tpu.memory_space<vmem>>, vector<16x128xf32>
    tpu.vector_store %arg4[%c0_21, %c0_22], %49 {strides = array<i32>} : memref<16x128xf32, #tpu.memory_space<vmem>>, vector<16x128xf32>,
    return
  }
  func.func @transform_0(%arg0: i32) -> (i32, i32) {
    %c0_i32 = arith.constant 0 : i32
    %c0_i32_0 = arith.constant 0 : i32
    return %arg0, %c0_i32 : i32, i32
  }
  func.func @transform_1(%arg0: i32) -> (i32, i32, i32) {
    %c0_i32 = arith.constant 0 : i32
    %c0_i32_0 = arith.constant 0 : i32
    %c0_i32_1 = arith.constant 0 : i32
    %c0_i32_2 = arith.constant 0 : i32
    return %c0_i32, %c0_i32_0, %c0_i32_1 : i32, i32, i32
  }
  func.func @transform_2(%arg0: i32) -> (i32, i32) {
    %c0_i32 = arith.constant 0 : i32
    %c0_i32_0 = arith.constant 0 : i32
    %c0_i32_1 = arith.constant 0 : i32
    return %c0_i32, %c0_i32_0 : i32, i32
  }
  func.func @transform_3(%arg0: i32) -> (i32, i32) {
    %c0_i32 = arith.constant 0 : i32
    %c0_i32_0 = arith.constant 0 : i32
    return %arg0, %c0_i32 : i32, i32
  }
}

</mosaic_0001>

<llo_original>
// kernel: tpu_custom_call.1
$region0: #{tpu_custom_call.1}
  #allocation0 [shape = 'u32[]', space=smem, size = 0x4, offset = 0x4, fixed_abs, tag = 'smem constant byte address 0x4 - core index']
  #allocation1 [shape = 'u32[144,128]{1,0:T(1,128)}', space=vmem, size = 0x12000, scoped, tag = 'internal scratch']
  %s0 = inlined_call_operand.hbm [shape: bf16[16,128], index: 0, kind: input, shape index: {}]
  %s1 = inlined_call_operand.hbm [shape: bf16[4,128,128], index: 1, kind: input, shape index: {}]
  %s2 = inlined_call_operand.hbm [shape: f32[4,128], index: 2, kind: input, shape index: {}]
  %s3 = inlined_call_operand.hbm [shape: f32[16,128], index: 3, kind: output, shape index: {}]
  %s4 = sld [smem:[#allocation0]]
  $region34: #{tpu_custom_call.1} parent=0
    _
  %s6 = ssub.s32 1, %s4
  %s7 = scalar_select 0, %s6, %s4
  $region1: #{tpu_custom_call.1} parent=0
    #allocation2 [shape = 'u8[4096]{0}', space=vmem, size = 0x1000, scoped, tag = 'input window, operand 0, single buffered']
    #allocation3 [shape = 's32[1]{0}', space=sflag, size = 0x4, scoped, tag = 'scoped memory for tpu_custom_call.1']
    #allocation4 [shape = 's32[1]{0}', space=sflag, size = 0x4, scoped, tag = 'scoped memory for tpu_custom_call.1']
    #allocation5 [shape = 'u8[131072]{0}', space=vmem, size = 0x20000, scoped, tag = 'input window, operand 1, single buffered']
    #allocation6 [shape = 's32[1]{0}', space=sflag, size = 0x4, scoped, tag = 'scoped memory for tpu_custom_call.1']
    #allocation7 [shape = 'u8[2048]{0}', space=vmem, size = 0x800, scoped, tag = 'input window, operand 2, single buffered']
    #allocation8 [shape = 'u8[8192]{0}', space=vmem, size = 0x2000, scoped, tag = 'output window, operand 0, single buffered']
    %8 = vsyncpa [#allocation3], 0
    %9 = vsyncpa [#allocation6], 0
    %10 = vsyncpa [#allocation4], 0
    // Predicated region
    $region2: #{tpu_custom_call.1} parent=1 // pred_check
      _
    $region3: #{tpu_custom_call.1} parent=1 // pred_check_branch
      %12 = sbr.rel (0) target = $region5
    $region4: #{tpu_custom_call.1} parent=1 // pred_region
      %s14 = ssub.s32 128, 128
      %15 = vsyncadd [#allocation3], %s14
      %s16 = sshll.u32 [#allocation2], 4
      %s17 = int_to_ptr.vmem [resolvable:$true] %s16
      %22 = dma.hbm_to_vmem [thread:$0]  %s0, 128, %s17, [#allocation3], 64, 64, 4
    $region5: #{tpu_custom_call.1} parent=1 // pred_fallthru
      _
    // Predicated region
    $region6: #{tpu_custom_call.1} parent=1 // pred_check
      _
    $region7: #{tpu_custom_call.1} parent=1 // pred_check_branch
      %24 = sbr.rel (0) target = $region9
    $region8: #{tpu_custom_call.1} parent=1 // pred_region
      %s26 = ssub.s32 4096, 4096
      %27 = vsyncadd [#allocation6], %s26
      %s28 = sshll.u32 [#allocation5], 4
      %s29 = int_to_ptr.vmem [resolvable:$true] %s28
      %34 = dma.hbm_to_vmem [thread:$0]  %s1, 4096, %s29, [#allocation6], 64, 64, 4
    $region9: #{tpu_custom_call.1} parent=1 // pred_fallthru
      _
    // Predicated region
    $region10: #{tpu_custom_call.1} parent=1 // pred_check
      _
    $region11: #{tpu_custom_call.1} parent=1 // pred_check_branch
      %36 = sbr.rel (0) target = $region13
    $region12: #{tpu_custom_call.1} parent=1 // pred_region
      %s38 = ssub.s32 64, 64
      %39 = vsyncadd [#allocation6], %s38
      %s41 = sshll.u32 [#allocation7], 4
      %s42 = int_to_ptr.vmem [resolvable:$true] %s41
      %44 = dma.hbm_to_vmem [thread:$0]  %s2, 64, %s42, [#allocation6]
    $region13: #{tpu_custom_call.1} parent=1 // pred_fallthru
      _
    // Predicated region
    $region14: #{tpu_custom_call.1} parent=1 // pred_check
      _
    $region15: #{tpu_custom_call.1} parent=1 // pred_check_branch
      %46 = sbr.rel (0) target = $region17
    $region16: #{tpu_custom_call.1} parent=1 // pred_region
      %47 = dma.done [#allocation3], 128
    $region17: #{tpu_custom_call.1} parent=1 // pred_fallthru
      _
    // Predicated region
    $region18: #{tpu_custom_call.1} parent=1 // pred_check
      _
    $region19: #{tpu_custom_call.1} parent=1 // pred_check_branch
      %49 = sbr.rel (0) target = $region21
    $region20: #{tpu_custom_call.1} parent=1 // pred_region
      %50 = dma.done [#allocation6], 4096
    $region21: #{tpu_custom_call.1} parent=1 // pred_fallthru
      _
    // Predicated region
    $region22: #{tpu_custom_call.1} parent=1 // pred_check
      _
    $region23: #{tpu_custom_call.1} parent=1 // pred_check_branch
      %52 = sbr.rel (0) target = $region25
    $region24: #{tpu_custom_call.1} parent=1 // pred_region
      %53 = dma.done [#allocation6], 64
    $region25: #{tpu_custom_call.1} parent=1 // pred_fallthru
      _
    %v55 = vld [vmem:[#allocation2] sm:$0xf]
    %v56 = vld [vmem:[#allocation2 + $0x4] sm:$0xf]
    %v57 = vld [vmem:[#allocation7] sm:$0xf]
    %v58 = vld [vmem:[#allocation5] sm:$0xf]
    %v59 = vld [vmem:[#allocation5 + $0x4] sm:$0xf]
    %v60 = vld [vmem:[#allocation5 + $0x8] sm:$0xf]
    %v61 = vld [vmem:[#allocation5 + $0xc] sm:$0xf]
    %v62 = vld [vmem:[#allocation5 + $0x10] sm:$0xf]
    %v63 = vld [vmem:[#allocation5 + $0x14] sm:$0xf]
    %v64 = vld [vmem:[#allocation5 + $0x18] sm:$0xf]
    %v65 = vld [vmem:[#allocation5 + $0x1c] sm:$0xf]
    %v66 = vld [vmem:[#allocation5 + $0x20] sm:$0xf]
    %v67 = vld [vmem:[#allocation5 + $0x24] sm:$0xf]
    %v68 = vld [vmem:[#allocation5 + $0x28] sm:$0xf]
    %v69 = vld [vmem:[#allocation5 + $0x2c] sm:$0xf]
    %v70 = vld [vmem:[#allocation5 + $0x30] sm:$0xf]
    %v71 = vld [vmem:[#allocation5 + $0x34] sm:$0xf]
    %v72 = vld [vmem:[#allocation5 + $0x38] sm:$0xf]
    %v73 = vld [vmem:[#allocation5 + $0x3c] sm:$0xf]
    %v74 = vlaneseq
    %v75 = vshrl.u32 %v74, 7
    %v76 = vsub.s32 0, %v75
    %v77 = vrot.slane %v57, %v76
    %v80 = vunpack.c.l.b16 %v55
    %v81 = vunpack.c.l.b16 %v56
    %v82 = vpack.c.b16 %v81, %v80
    %v100 = vunpack.c.l.b16 %v58
    %v101 = vunpack.c.l.b16 %v59
    %v102 = vunpack.c.l.b16 %v60
    %v103 = vunpack.c.l.b16 %v61
    %v104 = vunpack.c.l.b16 %v62
    %v105 = vunpack.c.l.b16 %v63
    %v106 = vunpack.c.l.b16 %v64
    %v107 = vunpack.c.l.b16 %v65
    %v108 = vunpack.c.l.b16 %v66
    %v109 = vunpack.c.l.b16 %v67
    %v110 = vunpack.c.l.b16 %v68
    %v111 = vunpack.c.l.b16 %v69
    %v112 = vunpack.c.l.b16 %v70
    %v113 = vunpack.c.l.b16 %v71
    %v114 = vunpack.c.l.b16 %v72
    %v115 = vunpack.c.l.b16 %v73
    %v116 = vpack.c.b16 %v101, %v100
    %v117 = vpack.c.b16 %v103, %v102
    %v118 = vpack.c.b16 %v105, %v104
    %v119 = vpack.c.b16 %v107, %v106
    %v120 = vpack.c.b16 %v109, %v108
    %v121 = vpack.c.b16 %v111, %v110
    %v122 = vpack.c.b16 %v113, %v112
    %v123 = vpack.c.b16 %v115, %v114
    %132 = vmatprep.subr.bf16.mxu0 0
    %133 = vmatpush1.bf16.msra.mxu0 %v123
    %134 = vmatprep.subr.bf16.mxu0 0
    %135 = vmatpush1.bf16.msra.mxu0 %v122
    %136 = vmatprep.subr.bf16.mxu0 0
    %137 = vmatpush1.bf16.msra.mxu0 %v121
    %138 = vmatprep.subr.bf16.mxu0 0
    %139 = vmatpush1.bf16.msra.mxu0 %v120
    %140 = vmatprep.subr.bf16.mxu0 0
    %141 = vmatpush1.bf16.msra.mxu0 %v119
    %142 = vmatprep.subr.bf16.mxu0 0
    %143 = vmatpush1.bf16.msra.mxu0 %v118
    %144 = vmatprep.subr.bf16.mxu0 0
    %145 = vmatpush1.bf16.msra.mxu0 %v117
    %146 = vmatprep.subr.bf16.mxu0 0
    %147 = vmatpush1.bf16.msra.mxu0 %v116
    %148 = vmatprep.subr.bf16.mxu0 0
    %149 = vmatpush2.bf16.msra.mxu0 0
    %150 = vmatprep.subr.bf16.mxu0 0
    %151 = vmatpush2.bf16.msra.mxu0 0
    %152 = vmatprep.subr.bf16.mxu0 0
    %153 = vmatpush2.bf16.msra.mxu0 0
    %154 = vmatprep.subr.bf16.mxu0 0
    %155 = vmatpush2.bf16.msra.mxu0 0
    %156 = vmatprep.subr.bf16.mxu0 0
    %157 = vmatpush2.bf16.msra.mxu0 0
    %158 = vmatprep.subr.bf16.mxu0 0
    %159 = vmatpush2.bf16.msra.mxu0 0
    %160 = vmatprep.subr.bf16.mxu0 0
    %161 = vmatpush2.bf16.msra.mxu0 0
    %162 = vmatprep.subr.bf16.mxu0 0
    %163 = vmatpush2.bf16.msra.mxu0 0
    %164 = vmatprep.mubr.bf16.mxu0 0
    %165 = vmatmul.mubr.bf16.gmra.mxu0 %v82
    %v166 = vpop.f32.mrf.mxu0
    %v167 = vadd.f32 %v77, %v166
    %v168 = vpop.f32.mrf.mxu0
    %v169 = vpop.f32.mrf.mxu0
    %v170 = vadd.f32 %v77, %v169
    %v171 = vpop.f32.mrf.mxu0
    %172 = vdwg.mxu0
    %v173 = vmax.f32 %v167, 0.0
    %v174 = vmax.f32 %v170, 0.0
    %v175 = vpack.c.bf16 %v174, %v173
    %s176 = scalar_lea.vmem [#allocation5], 64
    %v177 = vld [vmem:[%s176] sm:$0xf]
    %v178 = vld [vmem:[%s176 + $0x4] sm:$0xf]
    %v179 = vld [vmem:[%s176 + $0x8] sm:$0xf]
    %v180 = vld [vmem:[%s176 + $0xc] sm:$0xf]
    %v181 = vld [vmem:[%s176 + $0x10] sm:$0xf]
    %v182 = vld [vmem:[%s176 + $0x14] sm:$0xf]
    %v183 = vld [vmem:[%s176 + $0x18] sm:$0xf]
    %v184 = vld [vmem:[%s176 + $0x1c] sm:$0xf]
    %v185 = vld [vmem:[%s176 + $0x20] sm:$0xf]
    %v186 = vld [vmem:[%s176 + $0x24] sm:$0xf]
    %v187 = vld [vmem:[%s176 + $0x28] sm:$0xf]
    %v188 = vld [vmem:[%s176 + $0x2c] sm:$0xf]
    %v189 = vld [vmem:[%s176 + $0x30] sm:$0xf]
    %v190 = vld [vmem:[%s176 + $0x34] sm:$0xf]
    %v191 = vld [vmem:[%s176 + $0x38] sm:$0xf]
    %v192 = vld [vmem:[%s176 + $0x3c] sm:$0xf]
    %v193 = vlaneseq
    %v194 = vshrl.u32 %v193, 7
    %v195 = vsub.s32 1, %v194
    %v196 = vrot.slane %v57, %v195
    %v213 = vunpack.c.l.b16 %v177
    %v214 = vunpack.c.l.b16 %v178
    %v215 = vunpack.c.l.b16 %v179
    %v216 = vunpack.c.l.b16 %v180
    %v217 = vunpack.c.l.b16 %v181
    %v218 = vunpack.c.l.b16 %v182
    %v219 = vunpack.c.l.b16 %v183
    %v220 = vunpack.c.l.b16 %v184
    %v221 = vunpack.c.l.b16 %v185
    %v222 = vunpack.c.l.b16 %v186
    %v223 = vunpack.c.l.b16 %v187
    %v224 = vunpack.c.l.b16 %v188
    %v225 = vunpack.c.l.b16 %v189
    %v226 = vunpack.c.l.b16 %v190
    %v227 = vunpack.c.l.b16 %v191
    %v228 = vunpack.c.l.b16 %v192
    %v229 = vpack.c.b16 %v214, %v213
    %v230 = vpack.c.b16 %v216, %v215
    %v231 = vpack.c.b16 %v218, %v217
    %v232 = vpack.c.b16 %v220, %v219
    %v233 = vpack.c.b16 %v222, %v221
    %v234 = vpack.c.b16 %v224, %v223
    %v235 = vpack.c.b16 %v226, %v225
    %v236 = vpack.c.b16 %v228, %v227
    %245 = vmatprep.subr.bf16.mxu0 0
    %246 = vmatpush1.bf16.msra.mxu0 %v236
    %247 = vmatprep.subr.bf16.mxu0 0
    %248 = vmatpush1.bf16.msra.mxu0 %v235
    %249 = vmatprep.subr.bf16.mxu0 0
    %250 = vmatpush1.bf16.msra.mxu0 %v234
    %251 = vmatprep.subr.bf16.mxu0 0
    %252 = vmatpush1.bf16.msra.mxu0 %v233
    %253 = vmatprep.subr.bf16.mxu0 0
    %254 = vmatpush1.bf16.msra.mxu0 %v232
    %255 = vmatprep.subr.bf16.mxu0 0
    %256 = vmatpush1.bf16.msra.mxu0 %v231
    %257 = vmatprep.subr.bf16.mxu0 0
    %258 = vmatpush1.bf16.msra.mxu0 %v230
    %259 = vmatprep.subr.bf16.mxu0 0
    %260 = vmatpush1.bf16.msra.mxu0 %v229
    %261 = vmatprep.subr.bf16.mxu0 0
    %262 = vmatpush2.bf16.msra.mxu0 0
    %263 = vmatprep.subr.bf16.mxu0 0
    %264 = vmatpush2.bf16.msra.mxu0 0
    %265 = vmatprep.subr.bf16.mxu0 0
    %266 = vmatpush2.bf16.msra.mxu0 0
    %267 = vmatprep.subr.bf16.mxu0 0
    %268 = vmatpush2.bf16.msra.mxu0 0
    %269 = vmatprep.subr.bf16.mxu0 0
    %270 = vmatpush2.bf16.msra.mxu0 0
    %271 = vmatprep.subr.bf16.mxu0 0
    %272 = vmatpush2.bf16.msra.mxu0 0
    %273 = vmatprep.subr.bf16.mxu0 0
    %274 = vmatpush2.bf16.msra.mxu0 0
    %275 = vmatprep.subr.bf16.mxu0 0
    %276 = vmatpush2.bf16.msra.mxu0 0
    %277 = vmatprep.mubr.bf16.mxu0 0
    %278 = vmatmul.mubr.bf16.gmra.mxu0 %v175
    %v279 = vpop.f32.mrf.mxu0
    %v280 = vadd.f32 %v196, %v279
    %v281 = vpop.f32.mrf.mxu0
    %v282 = vpop.f32.mrf.mxu0
    %v283 = vadd.f32 %v196, %v282
    %v284 = vpop.f32.mrf.mxu0
    %285 = vdwg.mxu0
    %v286 = vmax.f32 %v280, 0.0
    %v287 = vmax.f32 %v283, 0.0
    %v288 = vpack.c.bf16 %v287, %v286
    %s289 = scalar_lea.vmem [#allocation5], 128
    %v290 = vld [vmem:[%s289] sm:$0xf]
    %v291 = vld [vmem:[%s289 + $0x4] sm:$0xf]
    %v292 = vld [vmem:[%s289 + $0x8] sm:$0xf]
    %v293 = vld [vmem:[%s289 + $0xc] sm:$0xf]
    %v294 = vld [vmem:[%s289 + $0x10] sm:$0xf]
    %v295 = vld [vmem:[%s289 + $0x14] sm:$0xf]
    %v296 = vld [vmem:[%s289 + $0x18] sm:$0xf]
    %v297 = vld [vmem:[%s289 + $0x1c] sm:$0xf]
    %v298 = vld [vmem:[%s289 + $0x20] sm:$0xf]
    %v299 = vld [vmem:[%s289 + $0x24] sm:$0xf]
    %v300 = vld [vmem:[%s289 + $0x28] sm:$0xf]
    %v301 = vld [vmem:[%s289 + $0x2c] sm:$0xf]
    %v302 = vld [vmem:[%s289 + $0x30] sm:$0xf]
    %v303 = vld [vmem:[%s289 + $0x34] sm:$0xf]
    %v304 = vld [vmem:[%s289 + $0x38] sm:$0xf]
    %v305 = vld [vmem:[%s289 + $0x3c] sm:$0xf]
    %v306 = vlaneseq
    %v307 = vshrl.u32 %v306, 7
    %v308 = vsub.s32 2, %v307
    %v309 = vrot.slane %v57, %v308
    %v326 = vunpack.c.l.b16 %v290
    %v327 = vunpack.c.l.b16 %v291
    %v328 = vunpack.c.l.b16 %v292
    %v329 = vunpack.c.l.b16 %v293
    %v330 = vunpack.c.l.b16 %v294
    %v331 = vunpack.c.l.b16 %v295
    %v332 = vunpack.c.l.b16 %v296
    %v333 = vunpack.c.l.b16 %v297
    %v334 = vunpack.c.l.b16 %v298
    %v335 = vunpack.c.l.b16 %v299
    %v336 = vunpack.c.l.b16 %v300
    %v337 = vunpack.c.l.b16 %v301
    %v338 = vunpack.c.l.b16 %v302
    %v339 = vunpack.c.l.b16 %v303
    %v340 = vunpack.c.l.b16 %v304
    %v341 = vunpack.c.l.b16 %v305
    %v342 = vpack.c.b16 %v327, %v326
    %v343 = vpack.c.b16 %v329, %v328
    %v344 = vpack.c.b16 %v331, %v330
    %v345 = vpack.c.b16 %v333, %v332
    %v346 = vpack.c.b16 %v335, %v334
    %v347 = vpack.c.b16 %v337, %v336
    %v348 = vpack.c.b16 %v339, %v338
    %v349 = vpack.c.b16 %v341, %v340
    %358 = vmatprep.subr.bf16.mxu0 0
    %359 = vmatpush1.bf16.msra.mxu0 %v349
    %360 = vmatprep.subr.bf16.mxu0 0
    %361 = vmatpush1.bf16.msra.mxu0 %v348
    %362 = vmatprep.subr.bf16.mxu0 0
    %363 = vmatpush1.bf16.msra.mxu0 %v347
    %364 = vmatprep.subr.bf16.mxu0 0
    %365 = vmatpush1.bf16.msra.mxu0 %v346
    %366 = vmatprep.subr.bf16.mxu0 0
    %367 = vmatpush1.bf16.msra.mxu0 %v345
    %368 = vmatprep.subr.bf16.mxu0 0
    %369 = vmatpush1.bf16.msra.mxu0 %v344
    %370 = vmatprep.subr.bf16.mxu0 0
    %371 = vmatpush1.bf16.msra.mxu0 %v343
    %372 = vmatprep.subr.bf16.mxu0 0
    %373 = vmatpush1.bf16.msra.mxu0 %v342
    %374 = vmatprep.subr.bf16.mxu0 0
    %375 = vmatpush2.bf16.msra.mxu0 0
    %376 = vmatprep.subr.bf16.mxu0 0
    %377 = vmatpush2.bf16.msra.mxu0 0
    %378 = vmatprep.subr.bf16.mxu0 0
    %379 = vmatpush2.bf16.msra.mxu0 0
    %380 = vmatprep.subr.bf16.mxu0 0
    %381 = vmatpush2.bf16.msra.mxu0 0
    %382 = vmatprep.subr.bf16.mxu0 0
    %383 = vmatpush2.bf16.msra.mxu0 0
    %384 = vmatprep.subr.bf16.mxu0 0
    %385 = vmatpush2.bf16.msra.mxu0 0
    %386 = vmatprep.subr.bf16.mxu0 0
    %387 = vmatpush2.bf16.msra.mxu0 0
    %388 = vmatprep.subr.bf16.mxu0 0
    %389 = vmatpush2.bf16.msra.mxu0 0
    %390 = vmatprep.mubr.bf16.mxu0 0
    %391 = vmatmul.mubr.bf16.gmra.mxu0 %v288
    %v392 = vpop.f32.mrf.mxu0
    %v393 = vadd.f32 %v309, %v392
    %v394 = vpop.f32.mrf.mxu0
    %v395 = vpop.f32.mrf.mxu0
    %v396 = vadd.f32 %v309, %v395
    %v397 = vpop.f32.mrf.mxu0
    %398 = vdwg.mxu0
    %v399 = vmax.f32 %v393, 0.0
    %v400 = vmax.f32 %v396, 0.0
    %v401 = vpack.c.bf16 %v400, %v399
    %s402 = scalar_lea.vmem [#allocation5], 192
    %v403 = vld [vmem:[%s402] sm:$0xf]
    %v404 = vld [vmem:[%s402 + $0x4] sm:$0xf]
    %v405 = vld [vmem:[%s402 + $0x8] sm:$0xf]
    %v406 = vld [vmem:[%s402 + $0xc] sm:$0xf]
    %v407 = vld [vmem:[%s402 + $0x10] sm:$0xf]
    %v408 = vld [vmem:[%s402 + $0x14] sm:$0xf]
    %v409 = vld [vmem:[%s402 + $0x18] sm:$0xf]
    %v410 = vld [vmem:[%s402 + $0x1c] sm:$0xf]
    %v411 = vld [vmem:[%s402 + $0x20] sm:$0xf]
    %v412 = vld [vmem:[%s402 + $0x24] sm:$0xf]
    %v413 = vld [vmem:[%s402 + $0x28] sm:$0xf]
    %v414 = vld [vmem:[%s402 + $0x2c] sm:$0xf]
    %v415 = vld [vmem:[%s402 + $0x30] sm:$0xf]
    %v416 = vld [vmem:[%s402 + $0x34] sm:$0xf]
    %v417 = vld [vmem:[%s402 + $0x38] sm:$0xf]
    %v418 = vld [vmem:[%s402 + $0x3c] sm:$0xf]
    %v419 = vlaneseq
    %v420 = vshrl.u32 %v419, 7
    %v421 = vsub.s32 3, %v420
    %v422 = vrot.slane %v57, %v421
    %v439 = vunpack.c.l.b16 %v403
    %v440 = vunpack.c.l.b16 %v404
    %v441 = vunpack.c.l.b16 %v405
    %v442 = vunpack.c.l.b16 %v406
    %v443 = vunpack.c.l.b16 %v407
    %v444 = vunpack.c.l.b16 %v408
    %v445 = vunpack.c.l.b16 %v409
    %v446 = vunpack.c.l.b16 %v410
    %v447 = vunpack.c.l.b16 %v411
    %v448 = vunpack.c.l.b16 %v412
    %v449 = vunpack.c.l.b16 %v413
    %v450 = vunpack.c.l.b16 %v414
    %v451 = vunpack.c.l.b16 %v415
    %v452 = vunpack.c.l.b16 %v416
    %v453 = vunpack.c.l.b16 %v417
    %v454 = vunpack.c.l.b16 %v418
    %v455 = vpack.c.b16 %v440, %v439
    %v456 = vpack.c.b16 %v442, %v441
    %v457 = vpack.c.b16 %v444, %v443
    %v458 = vpack.c.b16 %v446, %v445
    %v459 = vpack.c.b16 %v448, %v447
    %v460 = vpack.c.b16 %v450, %v449
    %v461 = vpack.c.b16 %v452, %v451
    %v462 = vpack.c.b16 %v454, %v453
    %471 = vmatprep.subr.bf16.mxu0 0
    %472 = vmatpush1.bf16.msra.mxu0 %v462
    %473 = vmatprep.subr.bf16.mxu0 0
    %474 = vmatpush1.bf16.msra.mxu0 %v461
    %475 = vmatprep.subr.bf16.mxu0 0
    %476 = vmatpush1.bf16.msra.mxu0 %v460
    %477 = vmatprep.subr.bf16.mxu0 0
    %478 = vmatpush1.bf16.msra.mxu0 %v459
    %479 = vmatprep.subr.bf16.mxu0 0
    %480 = vmatpush1.bf16.msra.mxu0 %v458
    %481 = vmatprep.subr.bf16.mxu0 0
    %482 = vmatpush1.bf16.msra.mxu0 %v457
    %483 = vmatprep.subr.bf16.mxu0 0
    %484 = vmatpush1.bf16.msra.mxu0 %v456
    %485 = vmatprep.subr.bf16.mxu0 0
    %486 = vmatpush1.bf16.msra.mxu0 %v455
    %487 = vmatprep.subr.bf16.mxu0 0
    %488 = vmatpush2.bf16.msra.mxu0 0
    %489 = vmatprep.subr.bf16.mxu0 0
    %490 = vmatpush2.bf16.msra.mxu0 0
    %491 = vmatprep.subr.bf16.mxu0 0
    %492 = vmatpush2.bf16.msra.mxu0 0
    %493 = vmatprep.subr.bf16.mxu0 0
    %494 = vmatpush2.bf16.msra.mxu0 0
    %495 = vmatprep.subr.bf16.mxu0 0
    %496 = vmatpush2.bf16.msra.mxu0 0
    %497 = vmatprep.subr.bf16.mxu0 0
    %498 = vmatpush2.bf16.msra.mxu0 0
    %499 = vmatprep.subr.bf16.mxu0 0
    %500 = vmatpush2.bf16.msra.mxu0 0
    %501 = vmatprep.subr.bf16.mxu0 0
    %502 = vmatpush2.bf16.msra.mxu0 0
    %503 = vmatprep.mubr.bf16.mxu0 0
    %504 = vmatmul.mubr.bf16.gmra.mxu0 %v401
    %v505 = vpop.f32.mrf.mxu0
    %v506 = vadd.f32 %v422, %v505
    %v507 = vpop.f32.mrf.mxu0
    %v508 = vpop.f32.mrf.mxu0
    %v509 = vadd.f32 %v422, %v508
    %v510 = vpop.f32.mrf.mxu0
    %511 = vdwg.mxu0
    %v512 = vlaneseq
    %v513 = vand.u32 %v512, 127
    %vm514 = vcmp.lt.s32.totalorder %v513, 16
    %v515 = vsel %vm514, %v506, -1e+30
    %v516 = vsel %vm514, %v509, -1e+30
    %517 = vmax.xlane.f32.xlu0 %v515
    %v518 = vpop.xlane.xlu0 %517
    %519 = vmax.xlane.f32.xlu0 %v516
    %v520 = vpop.xlane.xlu0 %519
    %v521 = vsub.f32 %v515, %v518
    %v522 = vsub.f32 %v516, %v520
    %v523 = vmul.f32 %v521, 1.442695
    %v524 = vpow.pop %v523
    %v525 = vmul.f32 %v522, 1.442695
    %v526 = vpow.pop %v525
    %527 = vadd.xlane.f32.xlu0 %v524
    %v528 = vpop.xlane.xlu0 %527
    %529 = vadd.xlane.f32.xlu0 %v526
    %v530 = vpop.xlane.xlu0 %529
    %v531 = vlog2.pop %v528
    %v532 = vmul.f32 %v531, 0.6931472
    %v533 = vlog2.pop %v530
    %v534 = vmul.f32 %v533, 0.6931472
    %v535 = vsub.f32 %v521, %v532
    %v536 = vsub.f32 %v522, %v534
    %537 = vst [vmem:[#allocation8] sm:$0xff] %v535
    %538 = vst [vmem:[#allocation8 + $0x8] sm:$0xff] %v536
    // Predicated region
    $region26: #{tpu_custom_call.1} parent=1 // pred_check
      _
    $region27: #{tpu_custom_call.1} parent=1 // pred_check_branch
      %540 = sbr.rel (0) target = $region29
    $region28: #{tpu_custom_call.1} parent=1 // pred_region
      %s542 = ssub.s32 256, 256
      %543 = vsyncadd [#allocation4], %s542
      %s544 = sshll.u32 [#allocation8], 4
      %s545 = int_to_ptr.vmem [resolvable:$true] %s544
      %550 = dma.vmem_to_hbm [thread:$0]  %s545, 256, %s3, [#allocation4], 128, 128, 8
    $region29: #{tpu_custom_call.1} parent=1 // pred_fallthru
      _
    // Predicated region
    $region30: #{tpu_custom_call.1} parent=1 // pred_check
      _
    $region31: #{tpu_custom_call.1} parent=1 // pred_check_branch
      %552 = sbr.rel (0) target = $region33
    $region32: #{tpu_custom_call.1} parent=1 // pred_region
      %553 = dma.done [#allocation4], 256
    $region33: #{tpu_custom_call.1} parent=1 // pred_fallthru
      _
    %554 = vsyncpa [#allocation3], 1
    %555 = vsyncpa [#allocation6], 1
    %556 = vsyncpa [#allocation4], 1

</llo_original>
